<compile_context>
chip_gen: v6e
topology: v6e:2x2x1
jax: 0.10.0
libtpu: 0.0.40
codegen_flags: <defaults>
</compile_context>

<pallas_src>
import jax
import jax.numpy as jnp
from jax.experimental import pallas as pl
from jax.experimental.pallas import tpu as pltpu


def mlp_kernel(x_ref, w1_ref, b1_ref, w2_ref, b2_ref, o_ref):
    # fc1: [TM, D](bf16) @ [D, L](bf16) -> f32 acc, + bias, ReLU (all f32 on VPU)
    h = jnp.dot(x_ref[...], w1_ref[...], preferred_element_type=jnp.float32)
    h = jnp.maximum(h + b1_ref[...], 0.0)
    # fc3: downcast h to bf16 only as the second matmul's MXU input.
    out = jnp.dot(h.astype(jnp.bfloat16), w2_ref[...],
                  preferred_element_type=jnp.float32)
    o_ref[...] = (out + b2_ref[...]).astype(o_ref.dtype)


def mlp_forward(x, w1, b1, w2, b2, *, tm=256):
    """x: [batch, input_dim] (any leading shape, flattened like x.view(-1, D));
    w1: [input_dim, latent]; b1: [latent]; w2: [latent, classes]; b2: [classes].
    Returns [batch, classes] in x's dtype."""
    out_dtype = x.dtype
    input_dim, latent_dim = w1.shape
    classes = w2.shape[1]

    # Flatten like the PyTorch forward's x.view(-1, input_dim).
    x = x.reshape(-1, input_dim)
    batch = x.shape[0]

    # --- Lane-dense output: pad classes up to a multiple of 128 with zeros. ---
    c_pad = pl.cdiv(classes, 128) * 128
    w2p = jnp.pad(w2, ((0, 0), (0, c_pad - classes)))
    b2p = jnp.pad(b2, (0, c_pad - classes))

    # --- Batch tiling: weights resident, x/out stream through the grid. ---
    if batch <= tm:
        tm_eff = batch          # single tile; block == full array dim is legal
        b_pad = batch
    else:
        tm_eff = tm             # 256: multiple of 16 (bf16 sublane packing)
        b_pad = pl.cdiv(batch, tm_eff) * tm_eff
    if b_pad != batch:
        x = jnp.pad(x, ((0, b_pad - batch), (0, 0)))
    grid_m = b_pad // tm_eff

    # --- bf16 MXU operands; biases stay f32 (added on the f32 accumulator). ---
    x_bf = x.astype(jnp.bfloat16)
    w1_bf = w1.astype(jnp.bfloat16)
    w2_bf = w2p.astype(jnp.bfloat16)
    b1_2d = b1.reshape(1, latent_dim).astype(jnp.float32)
    b2_2d = b2p.reshape(1, c_pad).astype(jnp.float32)

    out_padded = pl.pallas_call(
        mlp_kernel,
        out_shape=jax.ShapeDtypeStruct((b_pad, c_pad), jnp.float32),
        grid_spec=pl.GridSpec(
            grid=(grid_m,),
            in_specs=[
                pl.BlockSpec((tm_eff, input_dim), lambda i: (i, 0)),      # x streams
                pl.BlockSpec((input_dim, latent_dim), lambda i: (0, 0)),  # W1 resident
                pl.BlockSpec((1, latent_dim), lambda i: (0, 0)),          # b1 resident
                pl.BlockSpec((latent_dim, c_pad), lambda i: (0, 0)),      # W2 resident
                pl.BlockSpec((1, c_pad), lambda i: (0, 0)),               # b2 resident
            ],
            out_specs=pl.BlockSpec((tm_eff, c_pad), lambda i: (i, 0)),
        ),
        compiler_params=pltpu.CompilerParams(
            dimension_semantics=("parallel",),        # batch tiles -> both TCs on v7x
            vmem_limit_bytes=32 * 1024 * 1024,        # safe on v5e/v6e/v7x
        ),
    )(x_bf, w1_bf, b1_2d, w2_bf, b2_2d)

    # Slice away batch/class padding.
    return out_padded[:batch, :classes].astype(out_dtype)


def init_mlp_params(key, input_dim, classes, latent_dim, dtype=jnp.float32):
    """Deterministic init matching nn.Linear's uniform(-1/sqrt(fan_in), 1/sqrt(fan_in))."""
    k1, k2, k3, k4 = jax.random.split(key, 4)
    bound1 = 1.0 / jnp.sqrt(float(input_dim))
    bound2 = 1.0 / jnp.sqrt(float(latent_dim))
    # Stored transposed vs. PyTorch (PyTorch keeps [out, in]; we keep [in, out]).
    w1 = jax.random.uniform(k1, (input_dim, latent_dim), dtype, -bound1, bound1)
    b1 = jax.random.uniform(k2, (latent_dim,), dtype, -bound1, bound1)
    w2 = jax.random.uniform(k3, (latent_dim, classes), dtype, -bound2, bound2)
    b2 = jax.random.uniform(k4, (classes,), dtype, -bound2, bound2)
    return w1, b1, w2, b2


if __name__ == "__main__":
    # Small but tiling-exercising shapes: batch=512 -> 2 grid tiles of TM=256.
    batch, input_dim, latent_dim, classes = 512, 64, 128, 16

    key = jax.random.PRNGKey(0)
    kx, kp = jax.random.split(key)
    x = jax.random.normal(kx, (batch, input_dim), dtype=jnp.float32)
    w1, b1, w2, b2 = init_mlp_params(kp, input_dim, classes, latent_dim)

    out = mlp_forward(x, w1, b1, w2, b2)
    out = jax.block_until_ready(out)
    assert out.shape == (batch, classes)

    # Reference emulating the same bf16-operand / f32-accumulate path.
    h_ref = jnp.dot(x.astype(jnp.bfloat16), w1.astype(jnp.bfloat16),
                    preferred_element_type=jnp.float32) + b1
    h_ref = jnp.maximum(h_ref, 0.0)
    ref = jnp.dot(h_ref.astype(jnp.bfloat16), w2.astype(jnp.bfloat16),
                  preferred_element_type=jnp.float32) + b2
    assert jnp.allclose(out, ref, atol=5e-3, rtol=5e-3), "mismatch vs bf16 reference"

    # Looser sanity check against the pure-f32 math.
    ref_f32 = jnp.maximum(x @ w1 + b1, 0.0) @ w2 + b2
    assert jnp.allclose(out, ref_f32, atol=5e-2, rtol=5e-2), "mismatch vs f32 reference"

    print("KERNEL_OK")
</pallas_src>

<mosaic_0001>
module attributes {stable_mosaic.version = 11 : i64} {
  func.func @mlp_kernel(%arg0: i32, %arg1: memref<256x64xbf16, #tpu.memory_space<vmem>>, %arg2: memref<64x128xbf16, #tpu.memory_space<vmem>>, %arg3: memref<1x128xf32, #tpu.memory_space<vmem>>, %arg4: memref<128x128xbf16, #tpu.memory_space<vmem>>, %arg5: memref<1x128xf32, #tpu.memory_space<vmem>>, %arg6: memref<256x128xf32, #tpu.memory_space<vmem>>) attributes {dimension_semantics = [#tpu.dimension_semantics<parallel>], iteration_bounds = array<i64: 2>, scalar_prefetch = 0 : i64, scratch_operands = 0 : i64, tpu.core_type = #tpu.core_type<tc>, window_params = [{transform_indices = @transform_0, window_bounds = array<i64: 256, 64>}, {pipeline_mode = #tpu.pipeline_mode<synchronous>, transform_indices = @transform_1, window_bounds = array<i64: 64, 128>}, {pipeline_mode = #tpu.pipeline_mode<synchronous>, transform_indices = @transform_2, window_bounds = array<i64: 1, 128>}, {pipeline_mode = #tpu.pipeline_mode<synchronous>, transform_indices = @transform_3, window_bounds = array<i64: 128, 128>}, {pipeline_mode = #tpu.pipeline_mode<synchronous>, transform_indices = @transform_4, window_bounds = array<i64: 1, 128>}, {transform_indices = @transform_5, window_bounds = array<i64: 256, 128>}]} {
    %c0 = arith.constant 0 : index
    %c0_0 = arith.constant 0 : index
    %0 = vector.load %arg1[%c0, %c0_0] : memref<256x64xbf16, #tpu.memory_space<vmem>>, vector<256x64xbf16>
    %c0_1 = arith.constant 0 : index
    %c0_2 = arith.constant 0 : index
    %1 = vector.load %arg2[%c0_1, %c0_2] : memref<64x128xbf16, #tpu.memory_space<vmem>>, vector<64x128xbf16>
    %cst = arith.constant dense<0.000000e+00> : vector<256x128xf32>
    %2 = tpu.matmul %0, %1, %cst {dimension_numbers = #tpu.dot_dimension_numbers<[1], [0], [0], [1], [0, 0, 1, 1], [], []>} : vector<256x64xbf16>, vector<64x128xbf16>, vector<256x128xf32> -> vector<256x128xf32>
    %c0_3 = arith.constant 0 : index
    %c0_4 = arith.constant 0 : index
    %3 = vector.load %arg3[%c0_3, %c0_4] : memref<1x128xf32, #tpu.memory_space<vmem>>, vector<1x128xf32>
    %4 = vector.broadcast %3 : vector<1x128xf32> to vector<256x128xf32>
    %5 = arith.addf %2, %4 : vector<256x128xf32>
    %cst_5 = arith.constant 0.000000e+00 : f32
    %6 = vector.broadcast %cst_5 : f32 to vector<256x128xf32>
    %7 = arith.maximumf %5, %6 : vector<256x128xf32>
    %8 = arith.truncf %7 : vector<256x128xf32> to vector<256x128xbf16>
    %c0_6 = arith.constant 0 : index
    %c0_7 = arith.constant 0 : index
    %9 = vector.load %arg4[%c0_6, %c0_7] : memref<128x128xbf16, #tpu.memory_space<vmem>>, vector<128x128xbf16>
    %cst_8 = arith.constant dense<0.000000e+00> : vector<256x128xf32>
    %10 = tpu.matmul %8, %9, %cst_8 {dimension_numbers = #tpu.dot_dimension_numbers<[1], [0], [0], [1], [0, 0, 1, 1], [], []>} : vector<256x128xbf16>, vector<128x128xbf16>, vector<256x128xf32> -> vector<256x128xf32>
    %c0_9 = arith.constant 0 : index
    %c0_10 = arith.constant 0 : index
    %11 = vector.load %arg5[%c0_9, %c0_10] : memref<1x128xf32, #tpu.memory_space<vmem>>, vector<1x128xf32>
    %12 = vector.broadcast %11 : vector<1x128xf32> to vector<256x128xf32>
    %13 = arith.addf %10, %12 : vector<256x128xf32>
    %c0_11 = arith.constant 0 : index
    %c0_12 = arith.constant 0 : index
    %14 = vector.load %arg6[%c0_11, %c0_12] : memref<256x128xf32, #tpu.memory_space<vmem>>, vector<256x128xf32>
    tpu.vector_store %arg6[%c0_11, %c0_12], %13 {strides = array<i32>} : memref<256x128xf32, #tpu.memory_space<vmem>>, vector<256x128xf32>,
    return
  }
  func.func @transform_0(%arg0: i32) -> (i32, i32) {
    %c0_i32 = arith.constant 0 : i32
    %c0_i32_0 = arith.constant 0 : i32
    return %arg0, %c0_i32 : i32, i32
  }
  func.func @transform_1(%arg0: i32) -> (i32, i32) {
    %c0_i32 = arith.constant 0 : i32
    %c0_i32_0 = arith.constant 0 : i32
    %c0_i32_1 = arith.constant 0 : i32
    return %c0_i32, %c0_i32_0 : i32, i32
  }
  func.func @transform_2(%arg0: i32) -> (i32, i32) {
    %c0_i32 = arith.constant 0 : i32
    %c0_i32_0 = arith.constant 0 : i32
    %c0_i32_1 = arith.constant 0 : i32
    return %c0_i32, %c0_i32_0 : i32, i32
  }
  func.func @transform_3(%arg0: i32) -> (i32, i32) {
    %c0_i32 = arith.constant 0 : i32
    %c0_i32_0 = arith.constant 0 : i32
    %c0_i32_1 = arith.constant 0 : i32
    return %c0_i32, %c0_i32_0 : i32, i32
  }
  func.func @transform_4(%arg0: i32) -> (i32, i32) {
    %c0_i32 = arith.constant 0 : i32
    %c0_i32_0 = arith.constant 0 : i32
    %c0_i32_1 = arith.constant 0 : i32
    return %c0_i32, %c0_i32_0 : i32, i32
  }
  func.func @transform_5(%arg0: i32) -> (i32, i32) {
    %c0_i32 = arith.constant 0 : i32
    %c0_i32_0 = arith.constant 0 : i32
    return %arg0, %c0_i32 : i32, i32
  }
}

</mosaic_0001>

<llo_original>
// kernel: tpu_custom_call.1
$region0: #{tpu_custom_call.1}
  #allocation0 [shape = 'u32[]', space=smem, size = 0x4, offset = 0x4, fixed_abs, tag = 'smem constant byte address 0x4 - core index']
  #allocation1 [shape = 'u32[144,128]{1,0:T(1,128)}', space=vmem, size = 0x12000, scoped, tag = 'internal scratch']
  %s0 = inlined_call_operand.vmem [shape: bf16[512,64], index: 0, kind: input, shape index: {}]
  %s1 = inlined_call_operand.vmem [shape: bf16[64,128], index: 1, kind: input, shape index: {}]
  %s2 = inlined_call_operand.vmem [shape: f32[1,128], index: 2, kind: input, shape index: {}]
  %s3 = inlined_call_operand.vmem [shape: bf16[128,128], index: 3, kind: input, shape index: {}]
  %s4 = inlined_call_operand.vmem [shape: f32[1,128], index: 4, kind: input, shape index: {}]
  %s5 = inlined_call_operand.hbm [shape: f32[512,128], index: 5, kind: output, shape index: {}]
  %s6 = sld [smem:[#allocation0]]
  $region53: #{tpu_custom_call.1} parent=0
    _
  %s8 = ssub.s32 1, %s6
  %s9 = scalar_select 0, %s8, %s6
  $region1: #{tpu_custom_call.1} parent=0
    #allocation2 [shape = 'u8[262144]{0}', space=vmem, size = 0x40000, scoped, tag = 'output window, operand 0']
    #allocation3 [shape = 's32[2]{0}', space=sflag, size = 0x8, scoped, tag = 'scoped memory for tpu_custom_call.1']
    %10 = vsyncpa [#allocation3], 0
    %s11 = scalar_lea.sflag [#allocation3], 1
    %12 = vsyncpa %s11, 0
    loop: start=0, step=1, limit=4
    $region2: #{tpu_custom_call.1} parent=1 // loop_pre_header
      _
    $region3: #{tpu_custom_call.1} parent=1 // loop_header
      %s14 = sphi 0, %s18
      %p15 = scmp.ge.s32.totalorder %s14, 4
      %s24 = sphi 0, %s26
      %s27 = sphi 0, %s24
      %s28 = sphi 0, %s27
      %s44 = sphi 0, %s28
      %s48 = sphi 0, %s48
      %s50 = sphi 0, %s48
      %s51 = sphi 0, %s50
      %s65 = sphi 0, %s51
      %s69 = sphi 0, %s69
      %s71 = sphi 0, %s69
      %s72 = sphi 0, %s71
      %s86 = sphi 0, %s72
      %s90 = sphi 0, %s90
      %s92 = sphi 0, %s90
      %s93 = sphi 0, %s92
      %s107 = sphi 0, %s93
      %s111 = sphi 0, %s111
      %s113 = sphi 0, %s111
      %s114 = sphi 0, %s113
      %s128 = sphi 0, %s114
      %s134 = sphi 0, %s136
      %s137 = sphi 0, %s134
      %s138 = sphi 0, %s137
      %s154 = sphi 0, %s138
    $region4: #{tpu_custom_call.1} parent=1 // loop_header_branch
      %17 = sbr.rel (%p15) target = $region8
    $region5: #{tpu_custom_call.1} parent=1 // loop_body
      %s19 = ssub.s32 %s14, 1
      %s20 = ssub.s32 %s14, 2
      %s21 = sadd.s32 %s14, 1
      %s22 = ssub.s32 %s14, %s21
      %p23 = scmp.eq.s32.totalorder %s22, 0
      %s25 = sadd.s32 %s24, 1
      %s26 = scalar_select %p23, %s24, %s25
      %p29 = pneg %p23
      %p30 = scmp.eq.s32.totalorder %s14, 1
      %p31 = por %p29, %p30
      %p32 = scmp.ne.s32.totalorder %s24, %s27
      %p33 = scmp.eq.s32.totalorder %s14, 0
      %p34 = por %p32, %p33
      %p35 = scmp.ne.s32.totalorder %s24, %s27
      %p36 = scmp.eq.s32.totalorder %s19, 1
      %p37 = por %p35, %p36
      %p38 = scmp.ne.s32.totalorder %s27, %s28
      %p39 = scmp.eq.s32.totalorder %s19, 0
      %p40 = por %p38, %p39
      %p41 = scmp.ne.s32.totalorder %s27, %s28
      %p42 = scmp.eq.s32.totalorder %s20, 1
      %p43 = por %p41, %p42
      %p45 = scmp.ne.s32.totalorder %s28, %s44
      %p46 = scmp.eq.s32.totalorder %s20, 0
      %p47 = por %p45, %p46
      %s49 = sadd.s32 %s48, 1
      %p52 = scmp.eq.s32.totalorder %s14, 1
      %p53 = scmp.ne.s32.totalorder %s48, %s50
      %p54 = scmp.eq.s32.totalorder %s14, 0
      %p55 = por %p53, %p54
      %p56 = scmp.ne.s32.totalorder %s48, %s50
      %p57 = scmp.eq.s32.totalorder %s19, 1
      %p58 = por %p56, %p57
      %p59 = scmp.ne.s32.totalorder %s50, %s51
      %p60 = scmp.eq.s32.totalorder %s19, 0
      %p61 = por %p59, %p60
      %p62 = scmp.ne.s32.totalorder %s50, %s51
      %p63 = scmp.eq.s32.totalorder %s20, 1
      %p64 = por %p62, %p63
      %p66 = scmp.ne.s32.totalorder %s51, %s65
      %p67 = scmp.eq.s32.totalorder %s20, 0
      %p68 = por %p66, %p67
      %s70 = sadd.s32 %s69, 1
      %p73 = scmp.eq.s32.totalorder %s14, 1
      %p74 = scmp.ne.s32.totalorder %s69, %s71
      %p75 = scmp.eq.s32.totalorder %s14, 0
      %p76 = por %p74, %p75
      %p77 = scmp.ne.s32.totalorder %s69, %s71
      %p78 = scmp.eq.s32.totalorder %s19, 1
      %p79 = por %p77, %p78
      %p80 = scmp.ne.s32.totalorder %s71, %s72
      %p81 = scmp.eq.s32.totalorder %s19, 0
      %p82 = por %p80, %p81
      %p83 = scmp.ne.s32.totalorder %s71, %s72
      %p84 = scmp.eq.s32.totalorder %s20, 1
      %p85 = por %p83, %p84
      %p87 = scmp.ne.s32.totalorder %s72, %s86
      %p88 = scmp.eq.s32.totalorder %s20, 0
      %p89 = por %p87, %p88
      %s91 = sadd.s32 %s90, 1
      %p94 = scmp.eq.s32.totalorder %s14, 1
      %p95 = scmp.ne.s32.totalorder %s90, %s92
      %p96 = scmp.eq.s32.totalorder %s14, 0
      %p97 = por %p95, %p96
      %p98 = scmp.ne.s32.totalorder %s90, %s92
      %p99 = scmp.eq.s32.totalorder %s19, 1
      %p100 = por %p98, %p99
      %p101 = scmp.ne.s32.totalorder %s92, %s93
      %p102 = scmp.eq.s32.totalorder %s19, 0
      %p103 = por %p101, %p102
      %p104 = scmp.ne.s32.totalorder %s92, %s93
      %p105 = scmp.eq.s32.totalorder %s20, 1
      %p106 = por %p104, %p105
      %p108 = scmp.ne.s32.totalorder %s93, %s107
      %p109 = scmp.eq.s32.totalorder %s20, 0
      %p110 = por %p108, %p109
      %s112 = sadd.s32 %s111, 1
      %p115 = scmp.eq.s32.totalorder %s14, 1
      %p116 = scmp.ne.s32.totalorder %s111, %s113
      %p117 = scmp.eq.s32.totalorder %s14, 0
      %p118 = por %p116, %p117
      %p119 = scmp.ne.s32.totalorder %s111, %s113
      %p120 = scmp.eq.s32.totalorder %s19, 1
      %p121 = por %p119, %p120
      %p122 = scmp.ne.s32.totalorder %s113, %s114
      %p123 = scmp.eq.s32.totalorder %s19, 0
      %p124 = por %p122, %p123
      %p125 = scmp.ne.s32.totalorder %s113, %s114
      %p126 = scmp.eq.s32.totalorder %s20, 1
      %p127 = por %p125, %p126
      %p129 = scmp.ne.s32.totalorder %s114, %s128
      %p130 = scmp.eq.s32.totalorder %s20, 0
      %p131 = por %p129, %p130
      %s132 = ssub.s32 %s14, %s21
      %p133 = scmp.eq.s32.totalorder %s132, 0
      %s135 = sadd.s32 %s134, 1
      %s136 = scalar_select %p133, %s134, %s135
      %p139 = pneg %p133
      %p140 = scmp.eq.s32.totalorder %s14, 1
      %p141 = por %p139, %p140
      %p142 = scmp.ne.s32.totalorder %s134, %s137
      %p143 = scmp.eq.s32.totalorder %s14, 0
      %p144 = por %p142, %p143
      %p145 = scmp.ne.s32.totalorder %s134, %s137
      %p146 = scmp.eq.s32.totalorder %s19, 1
      %p147 = por %p145, %p146
      %p148 = scmp.ne.s32.totalorder %s137, %s138
      %p149 = scmp.eq.s32.totalorder %s19, 0
      %p150 = por %p148, %p149
      %p151 = scmp.ne.s32.totalorder %s137, %s138
      %p152 = scmp.eq.s32.totalorder %s20, 1
      %p153 = por %p151, %p152
      %p155 = scmp.ne.s32.totalorder %s138, %s154
      %p156 = scmp.eq.s32.totalorder %s20, 0
      %p157 = por %p155, %p156
      %p158 = scmp.le.s32.totalorder 1, %s14
      %p159 = scmp.lt.s32.totalorder %s14, 3
      %p160 = pnand %p158, %p159
      %p161 = pneg %p160
      // Predicated region
      $region9: #{tpu_custom_call.1} parent=5 // pred_check
        _
      $region10: #{tpu_custom_call.1} parent=5 // pred_check_branch
        %163 = sbr.rel (%p160) target = $region12
      $region11: #{tpu_custom_call.1} parent=5 // pred_region
        %s164 = ssub.s32 %s14, 1
        // Predicated region
        $region13: #{tpu_custom_call.1} parent=11 // pred_check
          %p165 = pneg %p61
        $region14: #{tpu_custom_call.1} parent=11 // pred_check_branch
          %167 = sbr.rel (%p165) target = $region16
        $region15: #{tpu_custom_call.1} parent=11 // pred_region
          _
        $region16: #{tpu_custom_call.1} parent=11 // pred_fallthru
          _
        // Predicated region
        $region17: #{tpu_custom_call.1} parent=11 // pred_check
          %p168 = pneg %p82
        $region18: #{tpu_custom_call.1} parent=11 // pred_check_branch
          %170 = sbr.rel (%p168) target = $region20
        $region19: #{tpu_custom_call.1} parent=11 // pred_region
          _
        $region20: #{tpu_custom_call.1} parent=11 // pred_fallthru
          _
        // Predicated region
        $region21: #{tpu_custom_call.1} parent=11 // pred_check
          %p171 = pneg %p103
        $region22: #{tpu_custom_call.1} parent=11 // pred_check_branch
          %173 = sbr.rel (%p171) target = $region24
        $region23: #{tpu_custom_call.1} parent=11 // pred_region
          _
        $region24: #{tpu_custom_call.1} parent=11 // pred_fallthru
          _
        // Predicated region
        $region25: #{tpu_custom_call.1} parent=11 // pred_check
          %p174 = pneg %p124
        $region26: #{tpu_custom_call.1} parent=11 // pred_check_branch
          %176 = sbr.rel (%p174) target = $region28
        $region27: #{tpu_custom_call.1} parent=11 // pred_region
          _
        $region28: #{tpu_custom_call.1} parent=11 // pred_fallthru
          _
      $region12: #{tpu_custom_call.1} parent=5 // pred_fallthru
        _
      %p177 = scmp.lt.s32.totalorder %s14, 2
      // Predicated region
      $region29: #{tpu_custom_call.1} parent=5 // pred_check
        %p178 = pneg %p177
      $region30: #{tpu_custom_call.1} parent=5 // pred_check_branch
        %180 = sbr.rel (%p178) target = $region32
      $region31: #{tpu_custom_call.1} parent=5 // pred_region
        // Predicated region
        $region33: #{tpu_custom_call.1} parent=31 // pred_check
          %p181 = pneg %p34
        $region34: #{tpu_custom_call.1} parent=31 // pred_check_branch
          %183 = sbr.rel (%p181) target = $region36
        $region35: #{tpu_custom_call.1} parent=31 // pred_region
          %s184 = smul.u32 32, %s14
          %p185 = scmp.lt.s32.totalorder %s184, 63
          %s186 = scalar_select %p185, %s184, 63
          %s187 = smul.addr %s186, 4
          %s188 = scalar_lea.vmem %s0, %s187
          %s189 = smul.u32 32, %s14
        $region36: #{tpu_custom_call.1} parent=31 // pred_fallthru
          _
      $region32: #{tpu_custom_call.1} parent=5 // pred_fallthru
        _
      %p190 = scmp.le.s32.totalorder 1, %s14
      %p191 = scmp.lt.s32.totalorder %s14, 3
      %p192 = pnand %p190, %p191
      %p193 = pneg %p192
      // Predicated region
      $region37: #{tpu_custom_call.1} parent=5 // pred_check
        _
      $region38: #{tpu_custom_call.1} parent=5 // pred_check_branch
        %195 = sbr.rel (%p192) target = $region40
      $region39: #{tpu_custom_call.1} parent=5 // pred_region
        %s196 = ssub.s32 %s14, 1
        %s197 = smul.u32 32, %s19
        %p198 = scmp.lt.s32.totalorder %s197, 63
        %s199 = scalar_select %p198, %s197, 63
        %s200 = smul.addr %s199, 4
        %s201 = scalar_lea.vmem %s0, %s200
        %p202 = pneg %p40
        %p203 = pneg %p37
        %p204 = pneg %p61
        %p205 = pneg %p58
        %p206 = pneg %p82
        %p207 = pneg %p79
        %p208 = pneg %p103
        %p209 = pneg %p100
        %p210 = pneg %p124
        %p211 = pneg %p121
        %p212 = pneg %p150
        %p213 = pneg %p147
        %s214 = sand.u32 %s137, 1
        %s215 = scalar_lea.sflag [#allocation3], %s214
        %s216 = sand.u32 %s137, 1
        %s217 = smul.addr %s216, 256
        %s218 = scalar_lea.vmem [#allocation2], %s217
        %s219 = smul.u32 32, %s19
        %p220 = scmp.lt.s32.totalorder %s219, 63
        %s221 = scalar_select %p220, %s219, 63
        %s222 = smul.addr %s221, 4
        %s223 = scalar_lea.vmem %s0, %s222
        %s224 = smul.u32 32, %s19
        %s225 = smul.u32 32, %s19
        %v227 = vld [vmem:[%s223] sm:$0xf]
        %v228 = vld [vmem:[%s223 + $0x4] sm:$0xf]
        %v229 = vld [vmem:[%s223 + $0x8] sm:$0xf]
        %v230 = vld [vmem:[%s223 + $0xc] sm:$0xf]
        %v231 = vld [vmem:[%s223 + $0x10] sm:$0xf]
        %v232 = vld [vmem:[%s223 + $0x14] sm:$0xf]
        %v233 = vld [vmem:[%s223 + $0x18] sm:$0xf]
        %v234 = vld [vmem:[%s223 + $0x1c] sm:$0xf]
        %v235 = vld [vmem:[%s223 + $0x20] sm:$0xf]
        %v236 = vld [vmem:[%s223 + $0x24] sm:$0xf]
        %v237 = vld [vmem:[%s223 + $0x28] sm:$0xf]
        %v238 = vld [vmem:[%s223 + $0x2c] sm:$0xf]
        %v239 = vld [vmem:[%s223 + $0x30] sm:$0xf]
        %v240 = vld [vmem:[%s223 + $0x34] sm:$0xf]
        %v241 = vld [vmem:[%s223 + $0x38] sm:$0xf]
        %v242 = vld [vmem:[%s223 + $0x3c] sm:$0xf]
        %v243 = vld [vmem:[%s223 + $0x40] sm:$0xf]
        %v244 = vld [vmem:[%s223 + $0x44] sm:$0xf]
        %v245 = vld [vmem:[%s223 + $0x48] sm:$0xf]
        %v246 = vld [vmem:[%s223 + $0x4c] sm:$0xf]
        %v247 = vld [vmem:[%s223 + $0x50] sm:$0xf]
        %v248 = vld [vmem:[%s223 + $0x54] sm:$0xf]
        %v249 = vld [vmem:[%s223 + $0x58] sm:$0xf]
        %v250 = vld [vmem:[%s223 + $0x5c] sm:$0xf]
        %v251 = vld [vmem:[%s223 + $0x60] sm:$0xf]
        %v252 = vld [vmem:[%s223 + $0x64] sm:$0xf]
        %v253 = vld [vmem:[%s223 + $0x68] sm:$0xf]
        %v254 = vld [vmem:[%s223 + $0x6c] sm:$0xf]
        %v255 = vld [vmem:[%s223 + $0x70] sm:$0xf]
        %v256 = vld [vmem:[%s223 + $0x74] sm:$0xf]
        %v257 = vld [vmem:[%s223 + $0x78] sm:$0xf]
        %v258 = vld [vmem:[%s223 + $0x7c] sm:$0xf]
        %v259 = vld [vmem:[%s1] sm:$0xf]
        %v260 = vld [vmem:[%s1 + $0x4] sm:$0xf]
        %v261 = vld [vmem:[%s1 + $0x8] sm:$0xf]
        %v262 = vld [vmem:[%s1 + $0xc] sm:$0xf]
        %v263 = vld [vmem:[%s1 + $0x10] sm:$0xf]
        %v264 = vld [vmem:[%s1 + $0x14] sm:$0xf]
        %v265 = vld [vmem:[%s1 + $0x18] sm:$0xf]
        %v266 = vld [vmem:[%s1 + $0x1c] sm:$0xf]
        %v267 = vld [vmem:[%s2] sm:$0x1]
        %v269 = vlaneseq
        %v270 = vshrl.u32 %v269, 7
        %v271 = vsub.s32 0, %v270
        %v272 = vrot.slane %v267, %v271
        %v306 = vunpack.c.l.b16 %v227
        %v307 = vunpack.c.l.b16 %v228
        %v308 = vunpack.c.l.b16 %v229
        %v309 = vunpack.c.l.b16 %v230
        %v310 = vunpack.c.l.b16 %v231
        %v311 = vunpack.c.l.b16 %v232
        %v312 = vunpack.c.l.b16 %v233
        %v313 = vunpack.c.l.b16 %v234
        %v314 = vunpack.c.l.b16 %v235
        %v315 = vunpack.c.l.b16 %v236
        %v316 = vunpack.c.l.b16 %v237
        %v317 = vunpack.c.l.b16 %v238
        %v318 = vunpack.c.l.b16 %v239
        %v319 = vunpack.c.l.b16 %v240
        %v320 = vunpack.c.l.b16 %v241
        %v321 = vunpack.c.l.b16 %v242
        %v322 = vunpack.c.l.b16 %v243
        %v323 = vunpack.c.l.b16 %v244
        %v324 = vunpack.c.l.b16 %v245
        %v325 = vunpack.c.l.b16 %v246
        %v326 = vunpack.c.l.b16 %v247
        %v327 = vunpack.c.l.b16 %v248
        %v328 = vunpack.c.l.b16 %v249
        %v329 = vunpack.c.l.b16 %v250
        %v330 = vunpack.c.l.b16 %v251
        %v331 = vunpack.c.l.b16 %v252
        %v332 = vunpack.c.l.b16 %v253
        %v333 = vunpack.c.l.b16 %v254
        %v334 = vunpack.c.l.b16 %v255
        %v335 = vunpack.c.l.b16 %v256
        %v336 = vunpack.c.l.b16 %v257
        %v337 = vunpack.c.l.b16 %v258
        %v338 = vpack.c.b16 %v307, %v306
        %v339 = vpack.c.b16 %v309, %v308
        %v340 = vpack.c.b16 %v311, %v310
        %v341 = vpack.c.b16 %v313, %v312
        %v342 = vpack.c.b16 %v315, %v314
        %v343 = vpack.c.b16 %v317, %v316
        %v344 = vpack.c.b16 %v319, %v318
        %v345 = vpack.c.b16 %v321, %v320
        %v346 = vpack.c.b16 %v323, %v322
        %v347 = vpack.c.b16 %v325, %v324
        %v348 = vpack.c.b16 %v327, %v326
        %v349 = vpack.c.b16 %v329, %v328
        %v350 = vpack.c.b16 %v331, %v330
        %v351 = vpack.c.b16 %v333, %v332
        %v352 = vpack.c.b16 %v335, %v334
        %v353 = vpack.c.b16 %v337, %v336
        %v362 = vunpack.c.l.b16 %v259
        %v363 = vunpack.c.l.b16 %v260
        %v364 = vunpack.c.l.b16 %v261
        %v365 = vunpack.c.l.b16 %v262
        %v366 = vunpack.c.l.b16 %v263
        %v367 = vunpack.c.l.b16 %v264
        %v368 = vunpack.c.l.b16 %v265
        %v369 = vunpack.c.l.b16 %v266
        %v370 = vpack.c.b16 %v363, %v362
        %v371 = vpack.c.b16 %v365, %v364
        %v372 = vpack.c.b16 %v367, %v366
        %v373 = vpack.c.b16 %v369, %v368
        %vm378 = vcmask 523264
        %v380 = vsel %vm378, %v338, 0
        %v383 = vsel %vm378, %v339, 0
        %v386 = vsel %vm378, %v340, 0
        %v389 = vsel %vm378, %v341, 0
        %v392 = vsel %vm378, %v342, 0
        %v395 = vsel %vm378, %v343, 0
        %v398 = vsel %vm378, %v344, 0
        %v401 = vsel %vm378, %v345, 0
        %v404 = vsel %vm378, %v346, 0
        %v407 = vsel %vm378, %v347, 0
        %v410 = vsel %vm378, %v348, 0
        %v413 = vsel %vm378, %v349, 0
        %v416 = vsel %vm378, %v350, 0
        %v419 = vsel %vm378, %v351, 0
        %v422 = vsel %vm378, %v352, 0
        %v425 = vsel %vm378, %v353, 0
        %427 = vmatprep.subr.bf16.mxu0 0
        %428 = vmatpush1.bf16.msra.mxu0 0
        %429 = vmatprep.subr.bf16.mxu0 0
        %430 = vmatpush1.bf16.msra.mxu0 0
        %431 = vmatprep.subr.bf16.mxu0 0
        %432 = vmatpush1.bf16.msra.mxu0 0
        %433 = vmatprep.subr.bf16.mxu0 0
        %434 = vmatpush1.bf16.msra.mxu0 0
        %435 = vmatprep.subr.bf16.mxu0 0
        %436 = vmatpush1.bf16.msra.mxu0 %v373
        %437 = vmatprep.subr.bf16.mxu0 0
        %438 = vmatpush1.bf16.msra.mxu0 %v372
        %439 = vmatprep.subr.bf16.mxu0 0
        %440 = vmatpush1.bf16.msra.mxu0 %v371
        %441 = vmatprep.subr.bf16.mxu0 0
        %442 = vmatpush1.bf16.msra.mxu0 %v370
        %443 = vmatprep.subr.bf16.mxu0 0
        %444 = vmatpush2.bf16.msra.mxu0 0
        %445 = vmatprep.subr.bf16.mxu0 0
        %446 = vmatpush2.bf16.msra.mxu0 0
        %447 = vmatprep.subr.bf16.mxu0 0
        %448 = vmatpush2.bf16.msra.mxu0 0
        %449 = vmatprep.subr.bf16.mxu0 0
        %450 = vmatpush2.bf16.msra.mxu0 0
        %451 = vmatprep.subr.bf16.mxu0 0
        %452 = vmatpush2.bf16.msra.mxu0 0
        %453 = vmatprep.subr.bf16.mxu0 0
        %454 = vmatpush2.bf16.msra.mxu0 0
        %455 = vmatprep.subr.bf16.mxu0 0
        %456 = vmatpush2.bf16.msra.mxu0 0
        %457 = vmatprep.subr.bf16.mxu0 0
        %458 = vmatpush2.bf16.msra.mxu0 0
        %459 = vmatprep.mubr.bf16.mxu0 0
        %460 = vmatmul.mubr.bf16.gmra.mxu0 %v380
        %v461 = vpop.f32.mrf.mxu0
        %v462 = vadd.f32 %v272, %v461
        %v463 = vpop.f32.mrf.mxu0
        %v464 = vpop.f32.mrf.mxu0
        %v465 = vadd.f32 %v272, %v464
        %v466 = vpop.f32.mrf.mxu0
        %467 = vmatprep.mubr.bf16.mxu0 0
        %468 = vmatmul.mubr.bf16.gmra.mxu0 %v383
        %v469 = vpop.f32.mrf.mxu0
        %v470 = vadd.f32 %v272, %v469
        %v471 = vpop.f32.mrf.mxu0
        %v472 = vpop.f32.mrf.mxu0
        %v473 = vadd.f32 %v272, %v472
        %v474 = vpop.f32.mrf.mxu0
        %475 = vmatprep.mubr.bf16.mxu0 0
        %476 = vmatmul.mubr.bf16.gmra.mxu0 %v386
        %v477 = vpop.f32.mrf.mxu0
        %v478 = vadd.f32 %v272, %v477
        %v479 = vpop.f32.mrf.mxu0
        %v480 = vpop.f32.mrf.mxu0
        %v481 = vadd.f32 %v272, %v480
        %v482 = vpop.f32.mrf.mxu0
        %483 = vmatprep.mubr.bf16.mxu0 0
        %484 = vmatmul.mubr.bf16.gmra.mxu0 %v389
        %v485 = vpop.f32.mrf.mxu0
        %v486 = vadd.f32 %v272, %v485
        %v487 = vpop.f32.mrf.mxu0
        %v488 = vpop.f32.mrf.mxu0
        %v489 = vadd.f32 %v272, %v488
        %v490 = vpop.f32.mrf.mxu0
        %491 = vmatprep.mubr.bf16.mxu0 0
        %492 = vmatmul.mubr.bf16.gmra.mxu0 %v392
        %v493 = vpop.f32.mrf.mxu0
        %v494 = vadd.f32 %v272, %v493
        %v495 = vpop.f32.mrf.mxu0
        %v496 = vpop.f32.mrf.mxu0
        %v497 = vadd.f32 %v272, %v496
        %v498 = vpop.f32.mrf.mxu0
        %499 = vmatprep.mubr.bf16.mxu0 0
        %500 = vmatmul.mubr.bf16.gmra.mxu0 %v395
        %v501 = vpop.f32.mrf.mxu0
        %v502 = vadd.f32 %v272, %v501
        %v503 = vpop.f32.mrf.mxu0
        %v504 = vpop.f32.mrf.mxu0
        %v505 = vadd.f32 %v272, %v504
        %v506 = vpop.f32.mrf.mxu0
        %507 = vmatprep.mubr.bf16.mxu0 0
        %508 = vmatmul.mubr.bf16.gmra.mxu0 %v398
        %v509 = vpop.f32.mrf.mxu0
        %v510 = vadd.f32 %v272, %v509
        %v511 = vpop.f32.mrf.mxu0
        %v512 = vpop.f32.mrf.mxu0
        %v513 = vadd.f32 %v272, %v512
        %v514 = vpop.f32.mrf.mxu0
        %515 = vmatprep.mubr.bf16.mxu0 0
        %516 = vmatmul.mubr.bf16.gmra.mxu0 %v401
        %v517 = vpop.f32.mrf.mxu0
        %v518 = vadd.f32 %v272, %v517
        %v519 = vpop.f32.mrf.mxu0
        %v520 = vpop.f32.mrf.mxu0
        %v521 = vadd.f32 %v272, %v520
        %v522 = vpop.f32.mrf.mxu0
        %523 = vmatprep.mubr.bf16.mxu0 0
        %524 = vmatmul.mubr.bf16.gmra.mxu0 %v404
        %v525 = vpop.f32.mrf.mxu0
        %v526 = vadd.f32 %v272, %v525
        %v527 = vpop.f32.mrf.mxu0
        %v528 = vpop.f32.mrf.mxu0
        %v529 = vadd.f32 %v272, %v528
        %v530 = vpop.f32.mrf.mxu0
        %531 = vmatprep.mubr.bf16.mxu0 0
        %532 = vmatmul.mubr.bf16.gmra.mxu0 %v407
        %v533 = vpop.f32.mrf.mxu0
        %v534 = vadd.f32 %v272, %v533
        %v535 = vpop.f32.mrf.mxu0
        %v536 = vpop.f32.mrf.mxu0
        %v537 = vadd.f32 %v272, %v536
        %v538 = vpop.f32.mrf.mxu0
        %539 = vmatprep.mubr.bf16.mxu0 0
        %540 = vmatmul.mubr.bf16.gmra.mxu0 %v410
        %v541 = vpop.f32.mrf.mxu0
        %v542 = vadd.f32 %v272, %v541
        %v543 = vpop.f32.mrf.mxu0
        %v544 = vpop.f32.mrf.mxu0
        %v545 = vadd.f32 %v272, %v544
        %v546 = vpop.f32.mrf.mxu0
        %547 = vmatprep.mubr.bf16.mxu0 0
        %548 = vmatmul.mubr.bf16.gmra.mxu0 %v413
        %v549 = vpop.f32.mrf.mxu0
        %v550 = vadd.f32 %v272, %v549
        %v551 = vpop.f32.mrf.mxu0
        %v552 = vpop.f32.mrf.mxu0
        %v553 = vadd.f32 %v272, %v552
        %v554 = vpop.f32.mrf.mxu0
        %555 = vmatprep.mubr.bf16.mxu0 0
        %556 = vmatmul.mubr.bf16.gmra.mxu0 %v416
        %v557 = vpop.f32.mrf.mxu0
        %v558 = vadd.f32 %v272, %v557
        %v559 = vpop.f32.mrf.mxu0
        %v560 = vpop.f32.mrf.mxu0
        %v561 = vadd.f32 %v272, %v560
        %v562 = vpop.f32.mrf.mxu0
        %563 = vmatprep.mubr.bf16.mxu0 0
        %564 = vmatmul.mubr.bf16.gmra.mxu0 %v419
        %v565 = vpop.f32.mrf.mxu0
        %v566 = vadd.f32 %v272, %v565
        %v567 = vpop.f32.mrf.mxu0
        %v568 = vpop.f32.mrf.mxu0
        %v569 = vadd.f32 %v272, %v568
        %v570 = vpop.f32.mrf.mxu0
        %571 = vmatprep.mubr.bf16.mxu0 0
        %572 = vmatmul.mubr.bf16.gmra.mxu0 %v422
        %v573 = vpop.f32.mrf.mxu0
        %v574 = vadd.f32 %v272, %v573
        %v575 = vpop.f32.mrf.mxu0
        %v576 = vpop.f32.mrf.mxu0
        %v577 = vadd.f32 %v272, %v576
        %v578 = vpop.f32.mrf.mxu0
        %579 = vmatprep.mubr.bf16.mxu0 0
        %580 = vmatmul.mubr.bf16.gmra.mxu0 %v425
        %v581 = vpop.f32.mrf.mxu0
        %v582 = vadd.f32 %v272, %v581
        %v583 = vpop.f32.mrf.mxu0
        %v584 = vpop.f32.mrf.mxu0
        %v585 = vadd.f32 %v272, %v584
        %v586 = vpop.f32.mrf.mxu0
        %587 = vdwg.mxu0
        %v588 = vmax.f32 %v462, 0.0
        %v589 = vmax.f32 %v465, 0.0
        %v590 = vmax.f32 %v470, 0.0
        %v591 = vmax.f32 %v473, 0.0
        %v592 = vmax.f32 %v478, 0.0
        %v593 = vmax.f32 %v481, 0.0
        %v594 = vmax.f32 %v486, 0.0
        %v595 = vmax.f32 %v489, 0.0
        %v596 = vmax.f32 %v494, 0.0
        %v597 = vmax.f32 %v497, 0.0
        %v598 = vmax.f32 %v502, 0.0
        %v599 = vmax.f32 %v505, 0.0
        %v600 = vmax.f32 %v510, 0.0
        %v601 = vmax.f32 %v513, 0.0
        %v602 = vmax.f32 %v518, 0.0
        %v603 = vmax.f32 %v521, 0.0
        %v604 = vmax.f32 %v526, 0.0
        %v605 = vmax.f32 %v529, 0.0
        %v606 = vmax.f32 %v534, 0.0
        %v607 = vmax.f32 %v537, 0.0
        %v608 = vmax.f32 %v542, 0.0
        %v609 = vmax.f32 %v545, 0.0
        %v610 = vmax.f32 %v550, 0.0
        %v611 = vmax.f32 %v553, 0.0
        %v612 = vmax.f32 %v558, 0.0
        %v613 = vmax.f32 %v561, 0.0
        %v614 = vmax.f32 %v566, 0.0
        %v615 = vmax.f32 %v569, 0.0
        %v616 = vmax.f32 %v574, 0.0
        %v617 = vmax.f32 %v577, 0.0
        %v618 = vmax.f32 %v582, 0.0
        %v619 = vmax.f32 %v585, 0.0
        %v620 = vpack.c.bf16 %v589, %v588
        %v621 = vpack.c.bf16 %v591, %v590
        %v622 = vpack.c.bf16 %v593, %v592
        %v623 = vpack.c.bf16 %v595, %v594
        %v624 = vpack.c.bf16 %v597, %v596
        %v625 = vpack.c.bf16 %v599, %v598
        %v626 = vpack.c.bf16 %v601, %v600
        %v627 = vpack.c.bf16 %v603, %v602
        %v628 = vpack.c.bf16 %v605, %v604
        %v629 = vpack.c.bf16 %v607, %v606
        %v630 = vpack.c.bf16 %v609, %v608
        %v631 = vpack.c.bf16 %v611, %v610
        %v632 = vpack.c.bf16 %v613, %v612
        %v633 = vpack.c.bf16 %v615, %v614
        %v634 = vpack.c.bf16 %v617, %v616
        %v635 = vpack.c.bf16 %v619, %v618
        %v636 = vld [vmem:[%s3] sm:$0xf]
        %v637 = vld [vmem:[%s3 + $0x4] sm:$0xf]
        %v638 = vld [vmem:[%s3 + $0x8] sm:$0xf]
        %v639 = vld [vmem:[%s3 + $0xc] sm:$0xf]
        %v640 = vld [vmem:[%s3 + $0x10] sm:$0xf]
        %v641 = vld [vmem:[%s3 + $0x14] sm:$0xf]
        %v642 = vld [vmem:[%s3 + $0x18] sm:$0xf]
        %v643 = vld [vmem:[%s3 + $0x1c] sm:$0xf]
        %v644 = vld [vmem:[%s3 + $0x20] sm:$0xf]
        %v645 = vld [vmem:[%s3 + $0x24] sm:$0xf]
        %v646 = vld [vmem:[%s3 + $0x28] sm:$0xf]
        %v647 = vld [vmem:[%s3 + $0x2c] sm:$0xf]
        %v648 = vld [vmem:[%s3 + $0x30] sm:$0xf]
        %v649 = vld [vmem:[%s3 + $0x34] sm:$0xf]
        %v650 = vld [vmem:[%s3 + $0x38] sm:$0xf]
        %v651 = vld [vmem:[%s3 + $0x3c] sm:$0xf]
        %v652 = vld [vmem:[%s4] sm:$0x1]
        %v654 = vlaneseq
        %v655 = vshrl.u32 %v654, 7
        %v656 = vsub.s32 0, %v655
        %v657 = vrot.slane %v652, %v656
        %v675 = vunpack.c.l.b16 %v636
        %v676 = vunpack.c.l.b16 %v637
        %v677 = vunpack.c.l.b16 %v638
        %v678 = vunpack.c.l.b16 %v639
        %v679 = vunpack.c.l.b16 %v640
        %v680 = vunpack.c.l.b16 %v641
        %v681 = vunpack.c.l.b16 %v642
        %v682 = vunpack.c.l.b16 %v643
        %v683 = vunpack.c.l.b16 %v644
        %v684 = vunpack.c.l.b16 %v645
        %v685 = vunpack.c.l.b16 %v646
        %v686 = vunpack.c.l.b16 %v647
        %v687 = vunpack.c.l.b16 %v648
        %v688 = vunpack.c.l.b16 %v649
        %v689 = vunpack.c.l.b16 %v650
        %v690 = vunpack.c.l.b16 %v651
        %v691 = vpack.c.b16 %v676, %v675
        %v692 = vpack.c.b16 %v678, %v677
        %v693 = vpack.c.b16 %v680, %v679
        %v694 = vpack.c.b16 %v682, %v681
        %v695 = vpack.c.b16 %v684, %v683
        %v696 = vpack.c.b16 %v686, %v685
        %v697 = vpack.c.b16 %v688, %v687
        %v698 = vpack.c.b16 %v690, %v689
        %707 = vmatprep.subr.bf16.mxu0 0
        %708 = vmatpush1.bf16.msra.mxu0 %v698
        %709 = vmatprep.subr.bf16.mxu0 0
        %710 = vmatpush1.bf16.msra.mxu0 %v697
        %711 = vmatprep.subr.bf16.mxu0 0
        %712 = vmatpush1.bf16.msra.mxu0 %v696
        %713 = vmatprep.subr.bf16.mxu0 0
        %714 = vmatpush1.bf16.msra.mxu0 %v695
        %715 = vmatprep.subr.bf16.mxu0 0
        %716 = vmatpush1.bf16.msra.mxu0 %v694
        %717 = vmatprep.subr.bf16.mxu0 0
        %718 = vmatpush1.bf16.msra.mxu0 %v693
        %719 = vmatprep.subr.bf16.mxu0 0
        %720 = vmatpush1.bf16.msra.mxu0 %v692
        %721 = vmatprep.subr.bf16.mxu0 0
        %722 = vmatpush1.bf16.msra.mxu0 %v691
        %723 = vmatprep.subr.bf16.mxu0 0
        %724 = vmatpush2.bf16.msra.mxu0 0
        %725 = vmatprep.subr.bf16.mxu0 0
        %726 = vmatpush2.bf16.msra.mxu0 0
        %727 = vmatprep.subr.bf16.mxu0 0
        %728 = vmatpush2.bf16.msra.mxu0 0
        %729 = vmatprep.subr.bf16.mxu0 0
        %730 = vmatpush2.bf16.msra.mxu0 0
        %731 = vmatprep.subr.bf16.mxu0 0
        %732 = vmatpush2.bf16.msra.mxu0 0
        %733 = vmatprep.subr.bf16.mxu0 0
        %734 = vmatpush2.bf16.msra.mxu0 0
        %735 = vmatprep.subr.bf16.mxu0 0
        %736 = vmatpush2.bf16.msra.mxu0 0
        %737 = vmatprep.subr.bf16.mxu0 0
        %738 = vmatpush2.bf16.msra.mxu0 0
        %739 = vmatprep.mubr.bf16.mxu0 0
        %740 = vmatmul.mubr.bf16.gmra.mxu0 %v620
        %v741 = vpop.f32.mrf.mxu0
        %v742 = vadd.f32 %v657, %v741
        %v743 = vpop.f32.mrf.mxu0
        %v744 = vpop.f32.mrf.mxu0
        %v745 = vadd.f32 %v657, %v744
        %v746 = vpop.f32.mrf.mxu0
        %747 = vmatprep.mubr.bf16.mxu0 0
        %748 = vmatmul.mubr.bf16.gmra.mxu0 %v621
        %v749 = vpop.f32.mrf.mxu0
        %v750 = vadd.f32 %v657, %v749
        %v751 = vpop.f32.mrf.mxu0
        %v752 = vpop.f32.mrf.mxu0
        %v753 = vadd.f32 %v657, %v752
        %v754 = vpop.f32.mrf.mxu0
        %755 = vmatprep.mubr.bf16.mxu0 0
        %756 = vmatmul.mubr.bf16.gmra.mxu0 %v622
        %v757 = vpop.f32.mrf.mxu0
        %v758 = vadd.f32 %v657, %v757
        %v759 = vpop.f32.mrf.mxu0
        %v760 = vpop.f32.mrf.mxu0
        %v761 = vadd.f32 %v657, %v760
        %v762 = vpop.f32.mrf.mxu0
        %763 = vmatprep.mubr.bf16.mxu0 0
        %764 = vmatmul.mubr.bf16.gmra.mxu0 %v623
        %v765 = vpop.f32.mrf.mxu0
        %v766 = vadd.f32 %v657, %v765
        %v767 = vpop.f32.mrf.mxu0
        %v768 = vpop.f32.mrf.mxu0
        %v769 = vadd.f32 %v657, %v768
        %v770 = vpop.f32.mrf.mxu0
        %771 = vmatprep.mubr.bf16.mxu0 0
        %772 = vmatmul.mubr.bf16.gmra.mxu0 %v624
        %v773 = vpop.f32.mrf.mxu0
        %v774 = vadd.f32 %v657, %v773
        %v775 = vpop.f32.mrf.mxu0
        %v776 = vpop.f32.mrf.mxu0
        %v777 = vadd.f32 %v657, %v776
        %v778 = vpop.f32.mrf.mxu0
        %779 = vmatprep.mubr.bf16.mxu0 0
        %780 = vmatmul.mubr.bf16.gmra.mxu0 %v625
        %v781 = vpop.f32.mrf.mxu0
        %v782 = vadd.f32 %v657, %v781
        %v783 = vpop.f32.mrf.mxu0
        %v784 = vpop.f32.mrf.mxu0
        %v785 = vadd.f32 %v657, %v784
        %v786 = vpop.f32.mrf.mxu0
        %787 = vmatprep.mubr.bf16.mxu0 0
        %788 = vmatmul.mubr.bf16.gmra.mxu0 %v626
        %v789 = vpop.f32.mrf.mxu0
        %v790 = vadd.f32 %v657, %v789
        %v791 = vpop.f32.mrf.mxu0
        %v792 = vpop.f32.mrf.mxu0
        %v793 = vadd.f32 %v657, %v792
        %v794 = vpop.f32.mrf.mxu0
        %795 = vmatprep.mubr.bf16.mxu0 0
        %796 = vmatmul.mubr.bf16.gmra.mxu0 %v627
        %v797 = vpop.f32.mrf.mxu0
        %v798 = vadd.f32 %v657, %v797
        %v799 = vpop.f32.mrf.mxu0
        %v800 = vpop.f32.mrf.mxu0
        %v801 = vadd.f32 %v657, %v800
        %v802 = vpop.f32.mrf.mxu0
        %803 = vmatprep.mubr.bf16.mxu0 0
        %804 = vmatmul.mubr.bf16.gmra.mxu0 %v628
        %v805 = vpop.f32.mrf.mxu0
        %v806 = vadd.f32 %v657, %v805
        %v807 = vpop.f32.mrf.mxu0
        %v808 = vpop.f32.mrf.mxu0
        %v809 = vadd.f32 %v657, %v808
        %v810 = vpop.f32.mrf.mxu0
        %811 = vmatprep.mubr.bf16.mxu0 0
        %812 = vmatmul.mubr.bf16.gmra.mxu0 %v629
        %v813 = vpop.f32.mrf.mxu0
        %v814 = vadd.f32 %v657, %v813
        %v815 = vpop.f32.mrf.mxu0
        %v816 = vpop.f32.mrf.mxu0
        %v817 = vadd.f32 %v657, %v816
        %v818 = vpop.f32.mrf.mxu0
        %819 = vmatprep.mubr.bf16.mxu0 0
        %820 = vmatmul.mubr.bf16.gmra.mxu0 %v630
        %v821 = vpop.f32.mrf.mxu0
        %v822 = vadd.f32 %v657, %v821
        %v823 = vpop.f32.mrf.mxu0
        %v824 = vpop.f32.mrf.mxu0
        %v825 = vadd.f32 %v657, %v824
        %v826 = vpop.f32.mrf.mxu0
        %827 = vmatprep.mubr.bf16.mxu0 0
        %828 = vmatmul.mubr.bf16.gmra.mxu0 %v631
        %v829 = vpop.f32.mrf.mxu0
        %v830 = vadd.f32 %v657, %v829
        %v831 = vpop.f32.mrf.mxu0
        %v832 = vpop.f32.mrf.mxu0
        %v833 = vadd.f32 %v657, %v832
        %v834 = vpop.f32.mrf.mxu0
        %835 = vmatprep.mubr.bf16.mxu0 0
        %836 = vmatmul.mubr.bf16.gmra.mxu0 %v632
        %v837 = vpop.f32.mrf.mxu0
        %v838 = vadd.f32 %v657, %v837
        %v839 = vpop.f32.mrf.mxu0
        %v840 = vpop.f32.mrf.mxu0
        %v841 = vadd.f32 %v657, %v840
        %v842 = vpop.f32.mrf.mxu0
        %843 = vmatprep.mubr.bf16.mxu0 0
        %844 = vmatmul.mubr.bf16.gmra.mxu0 %v633
        %v845 = vpop.f32.mrf.mxu0
        %v846 = vadd.f32 %v657, %v845
        %v847 = vpop.f32.mrf.mxu0
        %v848 = vpop.f32.mrf.mxu0
        %v849 = vadd.f32 %v657, %v848
        %v850 = vpop.f32.mrf.mxu0
        %851 = vmatprep.mubr.bf16.mxu0 0
        %852 = vmatmul.mubr.bf16.gmra.mxu0 %v634
        %v853 = vpop.f32.mrf.mxu0
        %v854 = vadd.f32 %v657, %v853
        %v855 = vpop.f32.mrf.mxu0
        %v856 = vpop.f32.mrf.mxu0
        %v857 = vadd.f32 %v657, %v856
        %v858 = vpop.f32.mrf.mxu0
        %859 = vmatprep.mubr.bf16.mxu0 0
        %860 = vmatmul.mubr.bf16.gmra.mxu0 %v635
        %v861 = vpop.f32.mrf.mxu0
        %v862 = vadd.f32 %v657, %v861
        %v863 = vpop.f32.mrf.mxu0
        %v864 = vpop.f32.mrf.mxu0
        %v865 = vadd.f32 %v657, %v864
        %v866 = vpop.f32.mrf.mxu0
        %867 = vdwg.mxu0
        %868 = vst [vmem:[%s218] sm:$0xff] %v742
        %869 = vst [vmem:[%s218 + $0x8] sm:$0xff] %v745
        %870 = vst [vmem:[%s218 + $0x10] sm:$0xff] %v750
        %871 = vst [vmem:[%s218 + $0x18] sm:$0xff] %v753
        %872 = vst [vmem:[%s218 + $0x20] sm:$0xff] %v758
        %873 = vst [vmem:[%s218 + $0x28] sm:$0xff] %v761
        %874 = vst [vmem:[%s218 + $0x30] sm:$0xff] %v766
        %875 = vst [vmem:[%s218 + $0x38] sm:$0xff] %v769
        %876 = vst [vmem:[%s218 + $0x40] sm:$0xff] %v774
        %877 = vst [vmem:[%s218 + $0x48] sm:$0xff] %v777
        %878 = vst [vmem:[%s218 + $0x50] sm:$0xff] %v782
        %879 = vst [vmem:[%s218 + $0x58] sm:$0xff] %v785
        %880 = vst [vmem:[%s218 + $0x60] sm:$0xff] %v790
        %881 = vst [vmem:[%s218 + $0x68] sm:$0xff] %v793
        %882 = vst [vmem:[%s218 + $0x70] sm:$0xff] %v798
        %883 = vst [vmem:[%s218 + $0x78] sm:$0xff] %v801
        %884 = vst [vmem:[%s218 + $0x80] sm:$0xff] %v806
        %885 = vst [vmem:[%s218 + $0x88] sm:$0xff] %v809
        %886 = vst [vmem:[%s218 + $0x90] sm:$0xff] %v814
        %887 = vst [vmem:[%s218 + $0x98] sm:$0xff] %v817
        %888 = vst [vmem:[%s218 + $0xa0] sm:$0xff] %v822
        %889 = vst [vmem:[%s218 + $0xa8] sm:$0xff] %v825
        %890 = vst [vmem:[%s218 + $0xb0] sm:$0xff] %v830
        %891 = vst [vmem:[%s218 + $0xb8] sm:$0xff] %v833
        %892 = vst [vmem:[%s218 + $0xc0] sm:$0xff] %v838
        %893 = vst [vmem:[%s218 + $0xc8] sm:$0xff] %v841
        %894 = vst [vmem:[%s218 + $0xd0] sm:$0xff] %v846
        %895 = vst [vmem:[%s218 + $0xd8] sm:$0xff] %v849
        %896 = vst [vmem:[%s218 + $0xe0] sm:$0xff] %v854
        %897 = vst [vmem:[%s218 + $0xe8] sm:$0xff] %v857
        %898 = vst [vmem:[%s218 + $0xf0] sm:$0xff] %v862
        %899 = vst [vmem:[%s218 + $0xf8] sm:$0xff] %v865
        %s900 = sand.u32 %s137, 1
        %s901 = scalar_lea.sflag [#allocation3], %s900
        %s902 = sand.u32 %s137, 1
        %s903 = smul.addr %s902, 256
        %s904 = scalar_lea.vmem [#allocation2], %s903
        // Predicated region
        $region41: #{tpu_custom_call.1} parent=39 // pred_check
          %p905 = pneg %p147
        $region42: #{tpu_custom_call.1} parent=39 // pred_check_branch
          %907 = sbr.rel (%p905) target = $region44
        $region43: #{tpu_custom_call.1} parent=39 // pred_region
          %s908 = smul.u32 32, %s19
          %s910 = ssub.s32 4096, 4096
          %911 = vsyncadd %s901, %s910
          %s912 = smul.addr %s908, 128
          %s913 = scalar_lea.hbm %s5, %s912
          %s914 = sshll.u32 %s904, 4
          %s915 = int_to_ptr.vmem [resolvable:$true] %s914
          %920 = dma.vmem_to_hbm [thread:$0]  %s915, 4096, %s913, %s901, 128, 128, 8
        $region44: #{tpu_custom_call.1} parent=39 // pred_fallthru
          _
      $region40: #{tpu_custom_call.1} parent=5 // pred_fallthru
        _
      %p921 = scmp.le.s32.totalorder 2, %s14
      // Predicated region
      $region45: #{tpu_custom_call.1} parent=5 // pred_check
        %p922 = pneg %p921
      $region46: #{tpu_custom_call.1} parent=5 // pred_check_branch
        %924 = sbr.rel (%p922) target = $region48
      $region47: #{tpu_custom_call.1} parent=5 // pred_region
        %s925 = ssub.s32 %s14, 2
        // Predicated region
        $region49: #{tpu_custom_call.1} parent=47 // pred_check
          %p926 = pneg %p153
        $region50: #{tpu_custom_call.1} parent=47 // pred_check_branch
          %928 = sbr.rel (%p926) target = $region52
        $region51: #{tpu_custom_call.1} parent=47 // pred_region
          %s929 = sand.u32 %s138, 1
          %s930 = scalar_lea.sflag [#allocation3], %s929
          %s931 = sand.u32 %s138, 1
          %s932 = smul.addr %s931, 256
          %s933 = scalar_lea.vmem [#allocation2], %s932
          %934 = dma.done %s930, 4096
        $region52: #{tpu_custom_call.1} parent=47 // pred_fallthru
          _
      $region48: #{tpu_custom_call.1} parent=5 // pred_fallthru
        _
    $region6: #{tpu_custom_call.1} parent=1 // loop_footer
      %s18 = sadd.s32 1, %s14
    $region7: #{tpu_custom_call.1} parent=1 // loop_footer_branch
      %13 = sbr.rel target = $region3
    $region8: #{tpu_custom_call.1} parent=1 // loop_exit
      _
    %935 = vsyncpa [#allocation3], 1
    %s936 = scalar_lea.sflag [#allocation3], 1
    %937 = vsyncpa %s936, 1

</llo_original>
